<compile_context>
chip_gen: v7x
topology: tpu7x:2x2x1
jax: 0.10.0
libtpu: 0.0.40
codegen_flags: <defaults>
</compile_context>

<pallas_src>
import jax
import jax.numpy as jnp
from jax import lax
from jax.experimental import pallas as pl
from jax.experimental.pallas import tpu as pltpu


def _attn_head_kernel(x_ref, w_ref, b_ref, o_ref):
    # x_ref: (Bt, T, C); w_ref: (C, 3*Hp); b_ref: (1, 3*Hp); o_ref: (Bt, T, Hp)
    Bt, T, C = x_ref.shape
    Hp = o_ref.shape[-1]

    # --- fused QKV projection: one big MXU matmul over Bt*T rows -------------
    x2d = x_ref[...].reshape(Bt * T, C)                               # (Bt*T, C)
    qkv = jnp.dot(x2d, w_ref[...], preferred_element_type=jnp.float32)
    qkv = qkv + b_ref[...]                                            # (Bt*T, 3Hp)
    qkv = qkv.reshape(Bt, T, 3 * Hp)

    # slices land on 128-lane boundaries (Hp is a multiple of 128)
    scale = 1.0 / (float(C) ** 0.5)           # module scales by n_embed ** -0.5
    q = qkv[:, :, 0:Hp] * scale               # fold scale into q (T*Hp muls)
    k = qkv[:, :, Hp:2 * Hp]
    v = qkv[:, :, 2 * Hp:3 * Hp]

    # --- scores: batched q @ k^T without materializing a transpose ----------
    wei = lax.dot_general(q, k, (((2,), (2,)), ((0,), (0,))),
                          preferred_element_type=jnp.float32)         # (Bt, T, T)

    # causal mask: position i attends to j <= i
    row = lax.broadcasted_iota(jnp.int32, (Bt, T, T), 1)
    col = lax.broadcasted_iota(jnp.int32, (Bt, T, T), 2)
    wei = jnp.where(row >= col, wei, jnp.float32(-1e30))

    # softmax over the last axis (EUP reciprocal for the denominator)
    wei = wei - jnp.max(wei, axis=-1, keepdims=True)
    p = jnp.exp(wei)
    p = p * pl.reciprocal(jnp.sum(p, axis=-1, keepdims=True), approx=True)

    # --- weighted sum of values ----------------------------------------------
    out = lax.dot_general(p, v, (((2,), (1,)), ((0,), (0,))),
                          preferred_element_type=jnp.float32)         # (Bt, T, Hp)
    o_ref[...] = out.astype(o_ref.dtype)


def _pick_batch_tile(B, cap=8):
    """Largest divisor of B that is <= cap (amortizes per-grid-step overhead)."""
    for bt in range(min(B, cap), 0, -1):
        if B % bt == 0:
            return bt
    return 1


def self_attention_head(x, wq, wk, wv, bq, bk, bv):
    """x: (B, T, C) f32; wq/wk/wv: (C, H) (pre-transposed nn.Linear); b*: (1, H)."""
    B, T, C = x.shape
    H = wq.shape[1]
    Hp = ((H + 127) // 128) * 128          # lane-dense padded head size
    Bt = _pick_batch_tile(B)

    # Fuse + pad the projection params: (C, 3*Hp) / (1, 3*Hp), zeros in the pad
    # columns so padded q/k/v columns are exactly zero (no effect on scores).
    dt = x.dtype
    w_qkv = jnp.zeros((C, 3 * Hp), dt)
    w_qkv = (w_qkv.at[:, 0:H].set(wq)
                   .at[:, Hp:Hp + H].set(wk)
                   .at[:, 2 * Hp:2 * Hp + H].set(wv))
    b_qkv = jnp.zeros((1, 3 * Hp), dt)
    b_qkv = (b_qkv.at[:, 0:H].set(bq)
                   .at[:, Hp:Hp + H].set(bk)
                   .at[:, 2 * Hp:2 * Hp + H].set(bv))

    out_padded = pl.pallas_call(
        _attn_head_kernel,
        out_shape=jax.ShapeDtypeStruct((B, T, Hp), dt),
        grid_spec=pltpu.PrefetchScalarGridSpec(
            num_scalar_prefetch=0,
            grid=(B // Bt,),
            in_specs=[
                pl.BlockSpec((Bt, T, C), lambda b: (b, 0, 0)),     # x (batch tile)
                pl.BlockSpec((C, 3 * Hp), lambda b: (0, 0)),       # fused W_qkv
                pl.BlockSpec((1, 3 * Hp), lambda b: (0, 0)),       # fused b_qkv
            ],
            out_specs=pl.BlockSpec((Bt, T, Hp), lambda b: (b, 0, 0)),
        ),
        compiler_params=pltpu.CompilerParams(
            dimension_semantics=("parallel",)),
    )(x, w_qkv, b_qkv)

    return out_padded[:, :, :H]


def _reference(x, wq, wk, wv, bq, bk, bv):
    B, T, C = x.shape
    q = x @ wq + bq
    k = x @ wk + bk
    v = x @ wv + bv
    wei = jnp.einsum("btd,bsd->bts", q, k) * (C ** -0.5)
    mask = jnp.tril(jnp.ones((T, T), dtype=bool))
    wei = jnp.where(mask[None], wei, -jnp.inf)
    wei = jax.nn.softmax(wei, axis=-1)
    return wei @ v


if __name__ == "__main__":
    # Small shapes consistent with the module's forward: (B, T, C), head_size H.
    B, T, C, H = 2, 8, 32, 16

    key = jax.random.PRNGKey(0)
    kx, kwq, kwk, kwv, kbq, kbk, kbv = jax.random.split(key, 7)

    x = jax.random.normal(kx, (B, T, C), dtype=jnp.float32)

    # Deterministic parameter init (nn.Linear-style uniform bound 1/sqrt(C)),
    # stored pre-transposed as (C, H).
    bound = 1.0 / (C ** 0.5)
    wq = jax.random.uniform(kwq, (C, H), jnp.float32, -bound, bound)
    wk = jax.random.uniform(kwk, (C, H), jnp.float32, -bound, bound)
    wv = jax.random.uniform(kwv, (C, H), jnp.float32, -bound, bound)
    bq = jax.random.uniform(kbq, (1, H), jnp.float32, -bound, bound)
    bk = jax.random.uniform(kbk, (1, H), jnp.float32, -bound, bound)
    bv = jax.random.uniform(kbv, (1, H), jnp.float32, -bound, bound)

    out = self_attention_head(x, wq, wk, wv, bq, bk, bv)
    out = jax.block_until_ready(out)

    ref = _reference(x, wq, wk, wv, bq, bk, bv)
    assert out.shape == (B, T, H)
    # approx=True reciprocal in the softmax denominator -> allow a small
    # hardware-approximation tolerance.
    max_err = float(jnp.max(jnp.abs(out - ref)))
    assert max_err < 1e-2, f"mismatch vs reference, max_err={max_err}"

    print("KERNEL_OK")
</pallas_src>

<mosaic_0001>
module attributes {stable_mosaic.version = 11 : i64} {
  func.func @_attn_head_kernel(%arg0: i32, %arg1: memref<2x8x32xf32, #tpu.memory_space<vmem>>, %arg2: memref<32x384xf32, #tpu.memory_space<vmem>>, %arg3: memref<1x384xf32, #tpu.memory_space<vmem>>, %arg4: memref<2x8x128xf32, #tpu.memory_space<vmem>>) attributes {dimension_semantics = [#tpu.dimension_semantics<parallel>], iteration_bounds = array<i64: 1>, scalar_prefetch = 0 : i64, scratch_operands = 0 : i64, tpu.core_type = #tpu.core_type<tc>, window_params = [{transform_indices = @transform_0, window_bounds = array<i64: 2, 8, 32>}, {pipeline_mode = #tpu.pipeline_mode<synchronous>, transform_indices = @transform_1, window_bounds = array<i64: 32, 384>}, {pipeline_mode = #tpu.pipeline_mode<synchronous>, transform_indices = @transform_2, window_bounds = array<i64: 1, 384>}, {transform_indices = @transform_3, window_bounds = array<i64: 2, 8, 128>}]} {
    %c0 = arith.constant 0 : index
    %c0_0 = arith.constant 0 : index
    %c0_1 = arith.constant 0 : index
    %0 = vector.load %arg1[%c0, %c0_0, %c0_1] : memref<2x8x32xf32, #tpu.memory_space<vmem>>, vector<2x8x32xf32>
    %1 = vector.shape_cast %0 : vector<2x8x32xf32> to vector<16x32xf32>
    %c0_2 = arith.constant 0 : index
    %c0_3 = arith.constant 0 : index
    %2 = vector.load %arg2[%c0_2, %c0_3] : memref<32x384xf32, #tpu.memory_space<vmem>>, vector<32x384xf32>
    %cst = arith.constant dense<0.000000e+00> : vector<16x384xf32>
    %3 = tpu.matmul %1, %2, %cst {dimension_numbers = #tpu.dot_dimension_numbers<[1], [0], [0], [1], [0, 0, 1, 1], [], []>} : vector<16x32xf32>, vector<32x384xf32>, vector<16x384xf32> -> vector<16x384xf32>
    %c0_4 = arith.constant 0 : index
    %c0_5 = arith.constant 0 : index
    %4 = vector.load %arg3[%c0_4, %c0_5] : memref<1x384xf32, #tpu.memory_space<vmem>>, vector<1x384xf32>
    %5 = vector.broadcast %4 : vector<1x384xf32> to vector<16x384xf32>
    %6 = arith.addf %3, %5 : vector<16x384xf32>
    %7 = vector.shape_cast %6 : vector<16x384xf32> to vector<2x8x384xf32>
    %8 = vector.extract_strided_slice %7 {offsets = [0, 0, 0], sizes = [2, 8, 128], strides = [1, 1, 1]} : vector<2x8x384xf32> to vector<2x8x128xf32>
    %cst_6 = arith.constant 0.176776692 : f32
    %9 = vector.broadcast %cst_6 : f32 to vector<2x8x128xf32>
    %10 = arith.mulf %8, %9 : vector<2x8x128xf32>
    %11 = vector.extract_strided_slice %7 {offsets = [0, 0, 128], sizes = [2, 8, 128], strides = [1, 1, 1]} : vector<2x8x384xf32> to vector<2x8x128xf32>
    %12 = vector.extract_strided_slice %7 {offsets = [0, 0, 256], sizes = [2, 8, 128], strides = [1, 1, 1]} : vector<2x8x384xf32> to vector<2x8x128xf32>
    %cst_7 = arith.constant dense<0.000000e+00> : vector<2x8x8xf32>
    %13 = tpu.matmul %10, %11, %cst_7 {dimension_numbers = #tpu.dot_dimension_numbers<[2], [2], [1], [1], [0, 0, 0, 1, 1, 1], [0], [0]>} : vector<2x8x128xf32>, vector<2x8x128xf32>, vector<2x8x8xf32> -> vector<2x8x8xf32>
    %14 = tpu.iota {dimensions = array<i32: 1>} : vector<2x8x8xi32>
    %15 = tpu.iota {dimensions = array<i32: 2>} : vector<2x8x8xi32>
    %16 = arith.cmpi sge, %14, %15 : vector<2x8x8xi32>
    %cst_8 = arith.constant -1.000000e+30 : f32
    %17 = vector.broadcast %cst_8 : f32 to vector<2x8x8xf32>
    %18 = arith.select %16, %13, %17 : vector<2x8x8xi1>, vector<2x8x8xf32>
    %cst_9 = arith.constant dense<0xFF800000> : vector<2x8xf32>
    %19 = vector.multi_reduction <maximumf>, %18, %cst_9 [2] : vector<2x8x8xf32> to vector<2x8xf32>
    %20 = vector.shape_cast %19 : vector<2x8xf32> to vector<2x8x1xf32>
    %21 = vector.broadcast %20 : vector<2x8x1xf32> to vector<2x8x8xf32>
    %22 = arith.subf %18, %21 : vector<2x8x8xf32>
    %23 = math.exp %22 : vector<2x8x8xf32>
    %cst_10 = arith.constant dense<0.000000e+00> : vector<2x8xf32>
    %24 = vector.multi_reduction <add>, %23, %cst_10 [2] : vector<2x8x8xf32> to vector<2x8xf32>
    %25 = vector.shape_cast %24 : vector<2x8xf32> to vector<2x8x1xf32>
    %26 = tpu.reciprocal %25 {approx = true} : vector<2x8x1xf32> -> vector<2x8x1xf32>
    %27 = vector.broadcast %26 : vector<2x8x1xf32> to vector<2x8x8xf32>
    %28 = arith.mulf %23, %27 : vector<2x8x8xf32>
    %cst_11 = arith.constant dense<0.000000e+00> : vector<2x8x128xf32>
    %29 = tpu.matmul %28, %12, %cst_11 {dimension_numbers = #tpu.dot_dimension_numbers<[2], [1], [1], [2], [0, 0, 0, 1, 1, 2], [0], [0]>} : vector<2x8x8xf32>, vector<2x8x128xf32>, vector<2x8x128xf32> -> vector<2x8x128xf32>
    %c0_12 = arith.constant 0 : index
    %c0_13 = arith.constant 0 : index
    %c0_14 = arith.constant 0 : index
    %30 = vector.load %arg4[%c0_12, %c0_13, %c0_14] : memref<2x8x128xf32, #tpu.memory_space<vmem>>, vector<2x8x128xf32>
    tpu.vector_store %arg4[%c0_12, %c0_13, %c0_14], %29 {strides = array<i32>} : memref<2x8x128xf32, #tpu.memory_space<vmem>>, vector<2x8x128xf32>,
    return
  }
  func.func @transform_0(%arg0: i32) -> (i32, i32, i32) {
    %c0_i32 = arith.constant 0 : i32
    %c0_i32_0 = arith.constant 0 : i32
    %c0_i32_1 = arith.constant 0 : i32
    return %arg0, %c0_i32, %c0_i32_0 : i32, i32, i32
  }
  func.func @transform_1(%arg0: i32) -> (i32, i32) {
    %c0_i32 = arith.constant 0 : i32
    %c0_i32_0 = arith.constant 0 : i32
    %c0_i32_1 = arith.constant 0 : i32
    return %c0_i32, %c0_i32_0 : i32, i32
  }
  func.func @transform_2(%arg0: i32) -> (i32, i32) {
    %c0_i32 = arith.constant 0 : i32
    %c0_i32_0 = arith.constant 0 : i32
    %c0_i32_1 = arith.constant 0 : i32
    return %c0_i32, %c0_i32_0 : i32, i32
  }
  func.func @transform_3(%arg0: i32) -> (i32, i32, i32) {
    %c0_i32 = arith.constant 0 : i32
    %c0_i32_0 = arith.constant 0 : i32
    %c0_i32_1 = arith.constant 0 : i32
    return %arg0, %c0_i32, %c0_i32_0 : i32, i32, i32
  }
}

</mosaic_0001>

<llo_original>
// kernel: tpu_custom_call.1
$region0: #{tpu_custom_call.1}
  #allocation0 [shape = 'u32[]', space=smem, size = 0x4, offset = 0x4, fixed_abs, tag = 'smem constant byte address 0x4 - core index']
  #allocation1 [shape = 'u32[144,128]{1,0:T(1,128)}', space=vmem, size = 0x12000, scoped, tag = 'internal scratch']
  %s0 = inlined_call_operand.hbm [shape: f32[2,8,32], index: 0, kind: input, shape index: {}]
  %s1 = inlined_call_operand.hbm [shape: f32[32,384], index: 1, kind: input, shape index: {}]
  %s2 = inlined_call_operand.vmem [shape: f32[1,384], index: 2, kind: input, shape index: {}]
  %s3 = inlined_call_operand.hbm [shape: f32[2,8,128], index: 3, kind: output, shape index: {}]
  %s4 = sld [smem:[#allocation0]]
  $region30: #{tpu_custom_call.1} parent=0
    _
  %s6 = ssub.s32 1, %s4
  %s7 = scalar_select 0, %s6, %s4
  $region1: #{tpu_custom_call.1} parent=0
    #allocation2 [shape = 'u8[8192]{0}', space=vmem, size = 0x2000, scoped, tag = 'input window, operand 0, single buffered']
    #allocation3 [shape = 's32[1]{0}', space=sflag, size = 0x4, scoped, tag = 'scoped memory for tpu_custom_call.1']
    #allocation4 [shape = 's32[1]{0}', space=sflag, size = 0x4, scoped, tag = 'scoped memory for tpu_custom_call.1']
    #allocation5 [shape = 'u8[49152]{0}', space=vmem, size = 0xc000, scoped, tag = 'input window, operand 1, single buffered']
    #allocation6 [shape = 's32[1]{0}', space=sflag, size = 0x4, scoped, tag = 'scoped memory for tpu_custom_call.1']
    #allocation7 [shape = 'u8[8192]{0}', space=vmem, size = 0x2000, scoped, tag = 'output window, operand 0, single buffered']
    %8 = vsyncpa [#allocation3], 0
    %9 = vsyncpa [#allocation6], 0
    %10 = vsyncpa [#allocation4], 0
    // Predicated region
    $region2: #{tpu_custom_call.1} parent=1 // pred_check
      _
    $region3: #{tpu_custom_call.1} parent=1 // pred_check_branch
      %12 = sbr.rel (0) target = $region5
    $region4: #{tpu_custom_call.1} parent=1 // pred_region
      %s14 = ssub.s32 256, 256
      %15 = vsyncadd [#allocation3], %s14
      %s16 = sshll.u32 [#allocation2], 4
      %s17 = int_to_ptr.vmem [resolvable:$true] %s16
      %22 = dma.hbm_to_vmem [thread:$0]  %s0, 256, %s17, [#allocation3], 128, 128, 8
    $region5: #{tpu_custom_call.1} parent=1 // pred_fallthru
      _
    // Predicated region
    $region6: #{tpu_custom_call.1} parent=1 // pred_check
      _
    $region7: #{tpu_custom_call.1} parent=1 // pred_check_branch
      %24 = sbr.rel (0) target = $region9
    $region8: #{tpu_custom_call.1} parent=1 // pred_region
      %s26 = ssub.s32 1536, 1536
      %27 = vsyncadd [#allocation6], %s26
      %s28 = sshll.u32 [#allocation5], 4
      %s29 = int_to_ptr.vmem [resolvable:$true] %s28
      %34 = dma.hbm_to_vmem [thread:$0]  %s1, 1536, %s29, [#allocation6], 384, 384, 24
    $region9: #{tpu_custom_call.1} parent=1 // pred_fallthru
      _
    // Predicated region
    $region10: #{tpu_custom_call.1} parent=1 // pred_check
      _
    $region11: #{tpu_custom_call.1} parent=1 // pred_check_branch
      %36 = sbr.rel (0) target = $region13
    $region12: #{tpu_custom_call.1} parent=1 // pred_region
      _
    $region13: #{tpu_custom_call.1} parent=1 // pred_fallthru
      _
    // Predicated region
    $region14: #{tpu_custom_call.1} parent=1 // pred_check
      _
    $region15: #{tpu_custom_call.1} parent=1 // pred_check_branch
      %38 = sbr.rel (0) target = $region17
    $region16: #{tpu_custom_call.1} parent=1 // pred_region
      %39 = dma.done [#allocation3], 256
    $region17: #{tpu_custom_call.1} parent=1 // pred_fallthru
      _
    // Predicated region
    $region18: #{tpu_custom_call.1} parent=1 // pred_check
      _
    $region19: #{tpu_custom_call.1} parent=1 // pred_check_branch
      %41 = sbr.rel (0) target = $region21
    $region20: #{tpu_custom_call.1} parent=1 // pred_region
      %42 = dma.done [#allocation6], 1536
    $region21: #{tpu_custom_call.1} parent=1 // pred_fallthru
      _
    %v43 = vld [vmem:[#allocation2] sm:$0xff]
    %v44 = vld [vmem:[#allocation2 + $0x8] sm:$0xff]
    %v45 = vld [vmem:[#allocation5] sm:$0xff]
    %v46 = vld [vmem:[#allocation5 + $0x8] sm:$0xff]
    %v47 = vld [vmem:[#allocation5 + $0x10] sm:$0xff]
    %v48 = vld [vmem:[#allocation5 + $0x18] sm:$0xff]
    %v49 = vld [vmem:[#allocation5 + $0x20] sm:$0xff]
    %v50 = vld [vmem:[#allocation5 + $0x28] sm:$0xff]
    %v51 = vld [vmem:[#allocation5 + $0x30] sm:$0xff]
    %v52 = vld [vmem:[#allocation5 + $0x38] sm:$0xff]
    %v53 = vld [vmem:[#allocation5 + $0x40] sm:$0xff]
    %v54 = vld [vmem:[#allocation5 + $0x48] sm:$0xff]
    %v55 = vld [vmem:[#allocation5 + $0x50] sm:$0xff]
    %v56 = vld [vmem:[#allocation5 + $0x58] sm:$0xff]
    %v57 = vld [vmem:[%s2] sm:$0x7]
    %v59 = vlaneseq
    %v60 = vshrl.u32 %v59, 7
    %v61 = vsub.s32 0, %v60
    %v62 = vrot.slane %v57, %v61
    %v63 = vlaneseq
    %v64 = vshrl.u32 %v63, 7
    %v65 = vsub.s32 1, %v64
    %v66 = vrot.slane %v57, %v65
    %v67 = vlaneseq
    %v68 = vshrl.u32 %v67, 7
    %v69 = vsub.s32 2, %v68
    %v70 = vrot.slane %v57, %v69
    %vm74 = vcmask 261120
    %v76 = vsel %vm74, %v43, 0
    %v79 = vsel %vm74, %v44, 0
    %81 = vmatprep.subr.mxu0 %v46
    %82 = vmatpush1.msra.mxu0 %v45
    %83 = vmatprep.subr.mxu0 %v49
    %84 = vmatpush1.msra.mxu0 %v48
    %85 = vmatprep.subr.mxu0 %v52
    %86 = vmatpush1.msra.mxu0 %v51
    %87 = vmatprep.subr.mxu0 %v55
    %88 = vmatpush1.msra.mxu0 %v54
    %89 = vmatprep.subr.mxu0 0.0
    %90 = vmatpush1.msra.mxu0 0.0
    %91 = vmatprep.subr.mxu0 0.0
    %92 = vmatpush1.msra.mxu0 0.0
    %93 = vmatprep.subr.mxu0 0.0
    %94 = vmatpush1.msra.mxu0 0.0
    %95 = vmatprep.subr.mxu0 0.0
    %96 = vmatpush1.msra.mxu0 0.0
    %97 = vmatprep.subr.mxu0 0.0
    %98 = vmatpush1.msra.mxu0 0.0
    %99 = vmatprep.subr.mxu0 0.0
    %100 = vmatpush1.msra.mxu0 0.0
    %101 = vmatprep.subr.mxu0 0.0
    %102 = vmatpush1.msra.mxu0 0.0
    %103 = vmatprep.subr.mxu0 0.0
    %104 = vmatpush1.msra.mxu0 0.0
    %105 = vmatprep.subr.mxu0 0.0
    %106 = vmatpush1.msra.mxu0 0.0
    %107 = vmatprep.subr.mxu0 0.0
    %108 = vmatpush1.msra.mxu0 0.0
    %109 = vmatprep.subr.mxu0 0.0
    %110 = vmatpush1.msra.mxu0 0.0
    %111 = vmatprep.subr.mxu0 0.0
    %112 = vmatpush1.msra.mxu0 0.0
    %113 = vmatprep.subr.mxu0 0.0
    %114 = vmatpush1.msra.mxu0 0.0
    %115 = vmatprep.subr.mxu0 0.0
    %116 = vmatpush1.msra.mxu0 0.0
    %117 = vmatprep.subr.mxu0 0.0
    %118 = vmatpush1.msra.mxu0 0.0
    %119 = vmatprep.subr.mxu0 0.0
    %120 = vmatpush1.msra.mxu0 0.0
    %121 = vmatprep.subr.mxu0 0.0
    %122 = vmatpush1.msra.mxu0 0.0
    %123 = vmatprep.subr.mxu0 0.0
    %124 = vmatpush1.msra.mxu0 0.0
    %125 = vmatprep.subr.mxu0 0.0
    %126 = vmatpush1.msra.mxu0 0.0
    %127 = vmatprep.subr.mxu0 0.0
    %128 = vmatpush1.msra.mxu0 0.0
    %129 = vmatprep.subr.mxu0 0.0
    %130 = vmatpush1.msra.mxu0 0.0
    %131 = vmatprep.subr.mxu0 0.0
    %132 = vmatpush1.msra.mxu0 0.0
    %133 = vmatprep.subr.mxu0 0.0
    %134 = vmatpush1.msra.mxu0 0.0
    %135 = vmatprep.subr.mxu0 0.0
    %136 = vmatpush1.msra.mxu0 0.0
    %137 = vmatprep.subr.mxu0 0.0
    %138 = vmatpush1.msra.mxu0 0.0
    %139 = vmatprep.subr.mxu0 0.0
    %140 = vmatpush1.msra.mxu0 0.0
    %141 = vmatprep.subr.mxu0 0.0
    %142 = vmatpush1.msra.mxu0 0.0
    %143 = vmatprep.subr.mxu0 0.0
    %144 = vmatpush1.msra.mxu0 0.0
    %145 = vmatprep.mubr.f32.mxu0 0.0
    %146 = vmatmul.mubr.f32.gmra.mrb[0].mxu0 %v76
    %v147 = vpop.f32.mrb[0].mxu0
    %v148 = vadd.f32 %v62, %v147
    %v149 = vpop.f32.mrb[0].mxu0
    %v150 = vadd.f32 %v66, %v149
    %151 = vmatprep.mubr.f32.mxu0 0.0
    %152 = vmatmul.mubr.f32.gmra.mrb[0].mxu0 %v79
    %v153 = vpop.f32.mrb[0].mxu0
    %v154 = vadd.f32 %v62, %v153
    %v155 = vpop.f32.mrb[0].mxu0
    %v156 = vadd.f32 %v66, %v155
    %157 = vdwg.mxu0
    %158 = vmatprep.subr.mxu0 0.0
    %159 = vmatpush1.msra.mxu0 %v47
    %160 = vmatprep.subr.mxu0 0.0
    %161 = vmatpush1.msra.mxu0 %v50
    %162 = vmatprep.subr.mxu0 0.0
    %163 = vmatpush1.msra.mxu0 %v53
    %164 = vmatprep.subr.mxu0 0.0
    %165 = vmatpush1.msra.mxu0 %v56
    %166 = vmatprep.subr.mxu0 0.0
    %167 = vmatpush1.msra.mxu0 0.0
    %168 = vmatprep.subr.mxu0 0.0
    %169 = vmatpush1.msra.mxu0 0.0
    %170 = vmatprep.subr.mxu0 0.0
    %171 = vmatpush1.msra.mxu0 0.0
    %172 = vmatprep.subr.mxu0 0.0
    %173 = vmatpush1.msra.mxu0 0.0
    %174 = vmatprep.subr.mxu0 0.0
    %175 = vmatpush1.msra.mxu0 0.0
    %176 = vmatprep.subr.mxu0 0.0
    %177 = vmatpush1.msra.mxu0 0.0
    %178 = vmatprep.subr.mxu0 0.0
    %179 = vmatpush1.msra.mxu0 0.0
    %180 = vmatprep.subr.mxu0 0.0
    %181 = vmatpush1.msra.mxu0 0.0
    %182 = vmatprep.subr.mxu0 0.0
    %183 = vmatpush1.msra.mxu0 0.0
    %184 = vmatprep.subr.mxu0 0.0
    %185 = vmatpush1.msra.mxu0 0.0
    %186 = vmatprep.subr.mxu0 0.0
    %187 = vmatpush1.msra.mxu0 0.0
    %188 = vmatprep.subr.mxu0 0.0
    %189 = vmatpush1.msra.mxu0 0.0
    %190 = vmatprep.subr.mxu0 0.0
    %191 = vmatpush1.msra.mxu0 0.0
    %192 = vmatprep.subr.mxu0 0.0
    %193 = vmatpush1.msra.mxu0 0.0
    %194 = vmatprep.subr.mxu0 0.0
    %195 = vmatpush1.msra.mxu0 0.0
    %196 = vmatprep.subr.mxu0 0.0
    %197 = vmatpush1.msra.mxu0 0.0
    %198 = vmatprep.subr.mxu0 0.0
    %199 = vmatpush1.msra.mxu0 0.0
    %200 = vmatprep.subr.mxu0 0.0
    %201 = vmatpush1.msra.mxu0 0.0
    %202 = vmatprep.subr.mxu0 0.0
    %203 = vmatpush1.msra.mxu0 0.0
    %204 = vmatprep.subr.mxu0 0.0
    %205 = vmatpush1.msra.mxu0 0.0
    %206 = vmatprep.subr.mxu0 0.0
    %207 = vmatpush1.msra.mxu0 0.0
    %208 = vmatprep.subr.mxu0 0.0
    %209 = vmatpush1.msra.mxu0 0.0
    %210 = vmatprep.subr.mxu0 0.0
    %211 = vmatpush1.msra.mxu0 0.0
    %212 = vmatprep.subr.mxu0 0.0
    %213 = vmatpush1.msra.mxu0 0.0
    %214 = vmatprep.subr.mxu0 0.0
    %215 = vmatpush1.msra.mxu0 0.0
    %216 = vmatprep.subr.mxu0 0.0
    %217 = vmatpush1.msra.mxu0 0.0
    %218 = vmatprep.subr.mxu0 0.0
    %219 = vmatpush1.msra.mxu0 0.0
    %220 = vmatprep.subr.mxu0 0.0
    %221 = vmatpush1.msra.mxu0 0.0
    %222 = vmatprep.mubr.f32.mxu0 0.0
    %223 = vmatmul.mubr.f32.gmra.mrb[0].mxu0 %v76
    %v224 = vpop.f32.mrb[0].mxu0
    %v225 = vadd.f32 %v70, %v224
    %v226 = vpop.f32.mrb[0].mxu0
    %227 = vmatprep.mubr.f32.mxu0 0.0
    %228 = vmatmul.mubr.f32.gmra.mrb[0].mxu0 %v79
    %v229 = vpop.f32.mrb[0].mxu0
    %v230 = vadd.f32 %v70, %v229
    %v231 = vpop.f32.mrb[0].mxu0
    %232 = vdwg.mxu0
    %v233 = vmul.f32 %v148, 0.17677669
    %v234 = vmul.f32 %v154, 0.17677669
    %235 = vmatprep.subr.mxu0 0.0
    %236 = vmatpush1.xpose.msra.mxu0 %v150
    %237 = vmatprep.subr.mxu0 0.0
    %238 = vmatpush1.xpose.msra.mxu0 0.0
    %239 = vmatprep.subr.mxu0 0.0
    %240 = vmatpush1.xpose.msra.mxu0 0.0
    %241 = vmatprep.subr.mxu0 0.0
    %242 = vmatpush1.xpose.msra.mxu0 0.0
    %243 = vmatprep.subr.mxu0 0.0
    %244 = vmatpush1.xpose.msra.mxu0 0.0
    %245 = vmatprep.subr.mxu0 0.0
    %246 = vmatpush1.xpose.msra.mxu0 0.0
    %247 = vmatprep.subr.mxu0 0.0
    %248 = vmatpush1.xpose.msra.mxu0 0.0
    %249 = vmatprep.subr.mxu0 0.0
    %250 = vmatpush1.xpose.msra.mxu0 0.0
    %251 = vmatprep.subr.mxu0 0.0
    %252 = vmatpush1.xpose.msra.mxu0 0.0
    %253 = vmatprep.subr.mxu0 0.0
    %254 = vmatpush1.xpose.msra.mxu0 0.0
    %255 = vmatprep.subr.mxu0 0.0
    %256 = vmatpush1.xpose.msra.mxu0 0.0
    %257 = vmatprep.subr.mxu0 0.0
    %258 = vmatpush1.xpose.msra.mxu0 0.0
    %259 = vmatprep.subr.mxu0 0.0
    %260 = vmatpush1.xpose.msra.mxu0 0.0
    %261 = vmatprep.subr.mxu0 0.0
    %262 = vmatpush1.xpose.msra.mxu0 0.0
    %263 = vmatprep.subr.mxu0 0.0
    %264 = vmatpush1.xpose.msra.mxu0 0.0
    %265 = vmatprep.subr.mxu0 0.0
    %266 = vmatpush1.xpose.msra.mxu0 0.0
    %267 = vmatprep.subr.mxu0 0.0
    %268 = vmatpush1.xpose.msra.mxu0 0.0
    %269 = vmatprep.subr.mxu0 0.0
    %270 = vmatpush1.xpose.msra.mxu0 0.0
    %271 = vmatprep.subr.mxu0 0.0
    %272 = vmatpush1.xpose.msra.mxu0 0.0
    %273 = vmatprep.subr.mxu0 0.0
    %274 = vmatpush1.xpose.msra.mxu0 0.0
    %275 = vmatprep.subr.mxu0 0.0
    %276 = vmatpush1.xpose.msra.mxu0 0.0
    %277 = vmatprep.subr.mxu0 0.0
    %278 = vmatpush1.xpose.msra.mxu0 0.0
    %279 = vmatprep.subr.mxu0 0.0
    %280 = vmatpush1.xpose.msra.mxu0 0.0
    %281 = vmatprep.subr.mxu0 0.0
    %282 = vmatpush1.xpose.msra.mxu0 0.0
    %283 = vmatprep.subr.mxu0 0.0
    %284 = vmatpush1.xpose.msra.mxu0 0.0
    %285 = vmatprep.subr.mxu0 0.0
    %286 = vmatpush1.xpose.msra.mxu0 0.0
    %287 = vmatprep.subr.mxu0 0.0
    %288 = vmatpush1.xpose.msra.mxu0 0.0
    %289 = vmatprep.subr.mxu0 0.0
    %290 = vmatpush1.xpose.msra.mxu0 0.0
    %291 = vmatprep.subr.mxu0 0.0
    %292 = vmatpush1.xpose.msra.mxu0 0.0
    %293 = vmatprep.subr.mxu0 0.0
    %294 = vmatpush1.xpose.msra.mxu0 0.0
    %295 = vmatprep.subr.mxu0 0.0
    %296 = vmatpush1.xpose.msra.mxu0 0.0
    %297 = vmatprep.subr.mxu0 0.0
    %298 = vmatpush1.xpose.msra.mxu0 0.0
    %299 = vmatprep.mubr.f32.mxu0 0.0
    %300 = vmatmul.mubr.f32.gmra.mrb[0].mxu0 %v233
    %v301 = vpop.f32.mrb[0].mxu0
    %v302 = vadd.f32 0.0, %v301
    %v303 = vpop.f32.mrb[0].mxu0
    %304 = vdwg.mxu0
    %305 = vmatprep.subr.mxu0 0.0
    %306 = vmatpush1.xpose.msra.mxu0 %v156
    %307 = vmatprep.subr.mxu0 0.0
    %308 = vmatpush1.xpose.msra.mxu0 0.0
    %309 = vmatprep.subr.mxu0 0.0
    %310 = vmatpush1.xpose.msra.mxu0 0.0
    %311 = vmatprep.subr.mxu0 0.0
    %312 = vmatpush1.xpose.msra.mxu0 0.0
    %313 = vmatprep.subr.mxu0 0.0
    %314 = vmatpush1.xpose.msra.mxu0 0.0
    %315 = vmatprep.subr.mxu0 0.0
    %316 = vmatpush1.xpose.msra.mxu0 0.0
    %317 = vmatprep.subr.mxu0 0.0
    %318 = vmatpush1.xpose.msra.mxu0 0.0
    %319 = vmatprep.subr.mxu0 0.0
    %320 = vmatpush1.xpose.msra.mxu0 0.0
    %321 = vmatprep.subr.mxu0 0.0
    %322 = vmatpush1.xpose.msra.mxu0 0.0
    %323 = vmatprep.subr.mxu0 0.0
    %324 = vmatpush1.xpose.msra.mxu0 0.0
    %325 = vmatprep.subr.mxu0 0.0
    %326 = vmatpush1.xpose.msra.mxu0 0.0
    %327 = vmatprep.subr.mxu0 0.0
    %328 = vmatpush1.xpose.msra.mxu0 0.0
    %329 = vmatprep.subr.mxu0 0.0
    %330 = vmatpush1.xpose.msra.mxu0 0.0
    %331 = vmatprep.subr.mxu0 0.0
    %332 = vmatpush1.xpose.msra.mxu0 0.0
    %333 = vmatprep.subr.mxu0 0.0
    %334 = vmatpush1.xpose.msra.mxu0 0.0
    %335 = vmatprep.subr.mxu0 0.0
    %336 = vmatpush1.xpose.msra.mxu0 0.0
    %337 = vmatprep.subr.mxu0 0.0
    %338 = vmatpush1.xpose.msra.mxu0 0.0
    %339 = vmatprep.subr.mxu0 0.0
    %340 = vmatpush1.xpose.msra.mxu0 0.0
    %341 = vmatprep.subr.mxu0 0.0
    %342 = vmatpush1.xpose.msra.mxu0 0.0
    %343 = vmatprep.subr.mxu0 0.0
    %344 = vmatpush1.xpose.msra.mxu0 0.0
    %345 = vmatprep.subr.mxu0 0.0
    %346 = vmatpush1.xpose.msra.mxu0 0.0
    %347 = vmatprep.subr.mxu0 0.0
    %348 = vmatpush1.xpose.msra.mxu0 0.0
    %349 = vmatprep.subr.mxu0 0.0
    %350 = vmatpush1.xpose.msra.mxu0 0.0
    %351 = vmatprep.subr.mxu0 0.0
    %352 = vmatpush1.xpose.msra.mxu0 0.0
    %353 = vmatprep.subr.mxu0 0.0
    %354 = vmatpush1.xpose.msra.mxu0 0.0
    %355 = vmatprep.subr.mxu0 0.0
    %356 = vmatpush1.xpose.msra.mxu0 0.0
    %357 = vmatprep.subr.mxu0 0.0
    %358 = vmatpush1.xpose.msra.mxu0 0.0
    %359 = vmatprep.subr.mxu0 0.0
    %360 = vmatpush1.xpose.msra.mxu0 0.0
    %361 = vmatprep.subr.mxu0 0.0
    %362 = vmatpush1.xpose.msra.mxu0 0.0
    %363 = vmatprep.subr.mxu0 0.0
    %364 = vmatpush1.xpose.msra.mxu0 0.0
    %365 = vmatprep.subr.mxu0 0.0
    %366 = vmatpush1.xpose.msra.mxu0 0.0
    %367 = vmatprep.subr.mxu0 0.0
    %368 = vmatpush1.xpose.msra.mxu0 0.0
    %369 = vmatprep.mubr.f32.mxu0 0.0
    %370 = vmatmul.mubr.f32.gmra.mrb[0].mxu0 %v234
    %v371 = vpop.f32.mrb[0].mxu0
    %v372 = vadd.f32 0.0, %v371
    %v373 = vpop.f32.mrb[0].mxu0
    %374 = vdwg.mxu0
    %v375 = vlaneseq
    %v376 = vshrl.u32 %v375, 7
    %v377 = vlaneseq
    %v378 = vand.u32 %v377, 127
    %vm379 = vcmp.ge.s32.totalorder %v376, %v378
    %v380 = vsel %vm379, %v302, -1e+30
    %v381 = vsel %vm379, %v372, -1e+30
    %vm382 = vcmask 64512
    %v383 = vsel %vm382, %v380, -inf
    %384 = vmax.xlane.f32.xlu0 %v383
    %v385 = vpop.xlane.xlu0 %384
    %v386 = vsel %vm382, %v381, -inf
    %387 = vmax.xlane.f32.xlu0 %v386
    %v388 = vpop.xlane.xlu0 %387
    %v389 = vsub.f32 %v380, %v385
    %v390 = vsub.f32 %v381, %v388
    %v391 = vmul.f32 %v389, 1.442695
    %v392 = vpow.pop %v391
    %v393 = vmul.f32 %v390, 1.442695
    %v394 = vpow.pop %v393
    %v395 = vsel %vm382, %v392, 0.0
    %396 = vadd.xlane.f32.xlu0 %v395
    %v397 = vpop.xlane.xlu0 %396
    %v398 = vsel %vm382, %v394, 0.0
    %399 = vadd.xlane.f32.xlu0 %v398
    %v400 = vpop.xlane.xlu0 %399
    %v401 = vrcp.pop %v397
    %v402 = vrcp.pop %v400
    %v403 = vmul.f32 %v392, %v401
    %v404 = vmul.f32 %v394, %v402
    %v406 = vsel %vm382, %v403, 0
    %408 = vmatprep.subr.mxu0 0.0
    %409 = vmatpush1.msra.mxu0 %v225
    %410 = vmatprep.subr.mxu0 0.0
    %411 = vmatpush1.msra.mxu0 0.0
    %412 = vmatprep.subr.mxu0 0.0
    %413 = vmatpush1.msra.mxu0 0.0
    %414 = vmatprep.subr.mxu0 0.0
    %415 = vmatpush1.msra.mxu0 0.0
    %416 = vmatprep.subr.mxu0 0.0
    %417 = vmatpush1.msra.mxu0 0.0
    %418 = vmatprep.subr.mxu0 0.0
    %419 = vmatpush1.msra.mxu0 0.0
    %420 = vmatprep.subr.mxu0 0.0
    %421 = vmatpush1.msra.mxu0 0.0
    %422 = vmatprep.subr.mxu0 0.0
    %423 = vmatpush1.msra.mxu0 0.0
    %424 = vmatprep.subr.mxu0 0.0
    %425 = vmatpush1.msra.mxu0 0.0
    %426 = vmatprep.subr.mxu0 0.0
    %427 = vmatpush1.msra.mxu0 0.0
    %428 = vmatprep.subr.mxu0 0.0
    %429 = vmatpush1.msra.mxu0 0.0
    %430 = vmatprep.subr.mxu0 0.0
    %431 = vmatpush1.msra.mxu0 0.0
    %432 = vmatprep.subr.mxu0 0.0
    %433 = vmatpush1.msra.mxu0 0.0
    %434 = vmatprep.subr.mxu0 0.0
    %435 = vmatpush1.msra.mxu0 0.0
    %436 = vmatprep.subr.mxu0 0.0
    %437 = vmatpush1.msra.mxu0 0.0
    %438 = vmatprep.subr.mxu0 0.0
    %439 = vmatpush1.msra.mxu0 0.0
    %440 = vmatprep.subr.mxu0 0.0
    %441 = vmatpush1.msra.mxu0 0.0
    %442 = vmatprep.subr.mxu0 0.0
    %443 = vmatpush1.msra.mxu0 0.0
    %444 = vmatprep.subr.mxu0 0.0
    %445 = vmatpush1.msra.mxu0 0.0
    %446 = vmatprep.subr.mxu0 0.0
    %447 = vmatpush1.msra.mxu0 0.0
    %448 = vmatprep.subr.mxu0 0.0
    %449 = vmatpush1.msra.mxu0 0.0
    %450 = vmatprep.subr.mxu0 0.0
    %451 = vmatpush1.msra.mxu0 0.0
    %452 = vmatprep.subr.mxu0 0.0
    %453 = vmatpush1.msra.mxu0 0.0
    %454 = vmatprep.subr.mxu0 0.0
    %455 = vmatpush1.msra.mxu0 0.0
    %456 = vmatprep.subr.mxu0 0.0
    %457 = vmatpush1.msra.mxu0 0.0
    %458 = vmatprep.subr.mxu0 0.0
    %459 = vmatpush1.msra.mxu0 0.0
    %460 = vmatprep.subr.mxu0 0.0
    %461 = vmatpush1.msra.mxu0 0.0
    %462 = vmatprep.subr.mxu0 0.0
    %463 = vmatpush1.msra.mxu0 0.0
    %464 = vmatprep.subr.mxu0 0.0
    %465 = vmatpush1.msra.mxu0 0.0
    %466 = vmatprep.subr.mxu0 0.0
    %467 = vmatpush1.msra.mxu0 0.0
    %468 = vmatprep.subr.mxu0 0.0
    %469 = vmatpush1.msra.mxu0 0.0
    %470 = vmatprep.subr.mxu0 0.0
    %471 = vmatpush1.msra.mxu0 0.0
    %472 = vmatprep.mubr.f32.mxu0 0.0
    %473 = vmatmul.mubr.f32.gmra.mrb[0].mxu0 %v406
    %v474 = vpop.f32.mrb[0].mxu0
    %v475 = vadd.f32 0.0, %v474
    %v476 = vpop.f32.mrb[0].mxu0
    %477 = vdwg.mxu0
    %v479 = vsel %vm382, %v404, 0
    %481 = vmatprep.subr.mxu0 0.0
    %482 = vmatpush1.msra.mxu0 %v230
    %483 = vmatprep.subr.mxu0 0.0
    %484 = vmatpush1.msra.mxu0 0.0
    %485 = vmatprep.subr.mxu0 0.0
    %486 = vmatpush1.msra.mxu0 0.0
    %487 = vmatprep.subr.mxu0 0.0
    %488 = vmatpush1.msra.mxu0 0.0
    %489 = vmatprep.subr.mxu0 0.0
    %490 = vmatpush1.msra.mxu0 0.0
    %491 = vmatprep.subr.mxu0 0.0
    %492 = vmatpush1.msra.mxu0 0.0
    %493 = vmatprep.subr.mxu0 0.0
    %494 = vmatpush1.msra.mxu0 0.0
    %495 = vmatprep.subr.mxu0 0.0
    %496 = vmatpush1.msra.mxu0 0.0
    %497 = vmatprep.subr.mxu0 0.0
    %498 = vmatpush1.msra.mxu0 0.0
    %499 = vmatprep.subr.mxu0 0.0
    %500 = vmatpush1.msra.mxu0 0.0
    %501 = vmatprep.subr.mxu0 0.0
    %502 = vmatpush1.msra.mxu0 0.0
    %503 = vmatprep.subr.mxu0 0.0
    %504 = vmatpush1.msra.mxu0 0.0
    %505 = vmatprep.subr.mxu0 0.0
    %506 = vmatpush1.msra.mxu0 0.0
    %507 = vmatprep.subr.mxu0 0.0
    %508 = vmatpush1.msra.mxu0 0.0
    %509 = vmatprep.subr.mxu0 0.0
    %510 = vmatpush1.msra.mxu0 0.0
    %511 = vmatprep.subr.mxu0 0.0
    %512 = vmatpush1.msra.mxu0 0.0
    %513 = vmatprep.subr.mxu0 0.0
    %514 = vmatpush1.msra.mxu0 0.0
    %515 = vmatprep.subr.mxu0 0.0
    %516 = vmatpush1.msra.mxu0 0.0
    %517 = vmatprep.subr.mxu0 0.0
    %518 = vmatpush1.msra.mxu0 0.0
    %519 = vmatprep.subr.mxu0 0.0
    %520 = vmatpush1.msra.mxu0 0.0
    %521 = vmatprep.subr.mxu0 0.0
    %522 = vmatpush1.msra.mxu0 0.0
    %523 = vmatprep.subr.mxu0 0.0
    %524 = vmatpush1.msra.mxu0 0.0
    %525 = vmatprep.subr.mxu0 0.0
    %526 = vmatpush1.msra.mxu0 0.0
    %527 = vmatprep.subr.mxu0 0.0
    %528 = vmatpush1.msra.mxu0 0.0
    %529 = vmatprep.subr.mxu0 0.0
    %530 = vmatpush1.msra.mxu0 0.0
    %531 = vmatprep.subr.mxu0 0.0
    %532 = vmatpush1.msra.mxu0 0.0
    %533 = vmatprep.subr.mxu0 0.0
    %534 = vmatpush1.msra.mxu0 0.0
    %535 = vmatprep.subr.mxu0 0.0
    %536 = vmatpush1.msra.mxu0 0.0
    %537 = vmatprep.subr.mxu0 0.0
    %538 = vmatpush1.msra.mxu0 0.0
    %539 = vmatprep.subr.mxu0 0.0
    %540 = vmatpush1.msra.mxu0 0.0
    %541 = vmatprep.subr.mxu0 0.0
    %542 = vmatpush1.msra.mxu0 0.0
    %543 = vmatprep.subr.mxu0 0.0
    %544 = vmatpush1.msra.mxu0 0.0
    %545 = vmatprep.mubr.f32.mxu0 0.0
    %546 = vmatmul.mubr.f32.gmra.mrb[0].mxu0 %v479
    %v547 = vpop.f32.mrb[0].mxu0
    %v548 = vadd.f32 0.0, %v547
    %v549 = vpop.f32.mrb[0].mxu0
    %550 = vdwg.mxu0
    %551 = vst [vmem:[#allocation7] sm:$0xff] %v475
    %552 = vst [vmem:[#allocation7 + $0x8] sm:$0xff] %v548
    // Predicated region
    $region22: #{tpu_custom_call.1} parent=1 // pred_check
      _
    $region23: #{tpu_custom_call.1} parent=1 // pred_check_branch
      %554 = sbr.rel (0) target = $region25
    $region24: #{tpu_custom_call.1} parent=1 // pred_region
      %s556 = ssub.s32 256, 256
      %557 = vsyncadd [#allocation4], %s556
      %s558 = sshll.u32 [#allocation7], 4
      %s559 = int_to_ptr.vmem [resolvable:$true] %s558
      %564 = dma.vmem_to_hbm [thread:$0]  %s559, 256, %s3, [#allocation4], 128, 128, 8
    $region25: #{tpu_custom_call.1} parent=1 // pred_fallthru
      _
    // Predicated region
    $region26: #{tpu_custom_call.1} parent=1 // pred_check
      _
    $region27: #{tpu_custom_call.1} parent=1 // pred_check_branch
      %566 = sbr.rel (0) target = $region29
    $region28: #{tpu_custom_call.1} parent=1 // pred_region
      %567 = dma.done [#allocation4], 256
    $region29: #{tpu_custom_call.1} parent=1 // pred_fallthru
      _
    %568 = vsyncpa [#allocation3], 1
    %569 = vsyncpa [#allocation6], 1
    %570 = vsyncpa [#allocation4], 1

</llo_original>
